<compile_context>
chip_gen: v7x
topology: tpu7x:2x2x1
jax: 0.10.0
libtpu: 0.0.40
codegen_flags: <defaults>
</compile_context>

<pallas_src>
import functools

import jax
import jax.numpy as jnp
from jax import lax
from jax.experimental import pallas as pl
from jax.experimental.pallas import tpu as pltpu


def _gumbel_encoder_kernel(temp_ref, w_ref, u_ref, xyz_ref, out_ref, *,
                           noise_scaling, eps=1e-20):
    """One grid step == one batch element.

    temp_ref : SMEM (1,)           temperature (scalar)
    w_ref    : VMEM (N_cg, N_aa)   weight, original PyTorch layout
    u_ref    : VMEM (N_aa, N_cg)   uniform(0,1) Gumbel base noise, native layout
    xyz_ref  : VMEM (1, N_aa, D)   this batch element's coordinates (native dtype)
    out_ref  : VMEM (1, D, N_cg)   encoded output, already in module layout
    """
    inv_t = 1.0 / temp_ref[0]

    # Everything in the (N_aa, N_cg) orientation (== PyTorch's weight.t()).
    # The tiny in-kernel weight transpose replaces the old wrapper-side u.T op.
    wt = jnp.transpose(w_ref[...].astype(jnp.float32))         # (N_aa, N_cg)
    logits = jnp.log(jnp.maximum(wt, 1e-6))
    u = u_ref[...].astype(jnp.float32)
    gumbel = -jnp.log(-jnp.log(u + eps) + eps)
    y = (logits + gumbel * noise_scaling) * inv_t

    # softmax over N_cg (lane axis) == F.softmax(..., dim=-1); approx recip on
    # the EUP slot is acceptable here (per review).
    y = y - jnp.max(y, axis=-1, keepdims=True)
    e = jnp.exp(y)
    sm = e * pl.reciprocal(jnp.sum(e, axis=-1, keepdims=True), approx=True)

    # Eij^T[n, c] = sm[n, c] / sum_m sm[m, c].  Exact divide (per review): this
    # factor multiplies the output directly, so no approx error lands there.
    # NOTE: no clamp on the column sum, to keep exact parity with PyTorch
    # (which also divides by CG.sum()).
    eij_t = sm / jnp.sum(sm, axis=0, keepdims=True)             # (N_aa, N_cg)

    # encoded[b].T = xyz[b].T @ Eij.T : one MXU contraction over N_aa whose
    # result is already in the module's (D, N_cg) output orientation.
    x = xyz_ref[0]                                              # (N_aa, D)
    enc = lax.dot_general(
        x, eij_t.astype(x.dtype),
        dimension_numbers=(((0,), (0,)), ((), ())),
        preferred_element_type=jnp.float32)                     # (D, N_cg)
    out_ref[0] = enc.astype(out_ref.dtype)


@functools.partial(jax.jit, static_argnames=("noise_scaling",))
def gumbel_var_encoder_forward(weight, u, xyz, temperature, noise_scaling=0.1):
    """weight: (N_cg, N_aa) parameter; u: (N_aa, N_cg) uniform(0,1) Gumbel base
    noise (same shape as PyTorch's logits); xyz: (B, N_aa, D); temperature:
    scalar from scheduler.current_temperature().
    Returns (B, D, N_cg), exactly like the PyTorch module's forward()."""
    n_cg, n_aa = weight.shape
    B, N, D = xyz.shape
    assert N == n_aa and u.shape == (n_aa, n_cg)

    temp = jnp.asarray(temperature, dtype=jnp.float32).reshape(1)
    out_dtype = jnp.result_type(weight.dtype, xyz.dtype)

    kernel = functools.partial(_gumbel_encoder_kernel,
                               noise_scaling=float(noise_scaling))

    return pl.pallas_call(
        kernel,
        out_shape=jax.ShapeDtypeStruct((B, D, n_cg), out_dtype),
        grid=(B,),
        in_specs=[
            pl.BlockSpec(memory_space=pltpu.SMEM),              # temperature
            pl.BlockSpec((n_cg, n_aa), lambda b: (0, 0)),       # weight
            pl.BlockSpec((n_aa, n_cg), lambda b: (0, 0)),       # noise U
            pl.BlockSpec((1, n_aa, D), lambda b: (b, 0, 0)),    # xyz[b]
        ],
        out_specs=pl.BlockSpec((1, D, n_cg), lambda b: (b, 0, 0)),
        compiler_params=pltpu.CompilerParams(
            dimension_semantics=("parallel",)),
    )(temp, weight, u, xyz)


def _ref_forward(weight, u, xyz, temperature, noise_scaling, eps=1e-20):
    """Pure-JAX reference mirroring the PyTorch forward exactly."""
    wt = weight.T
    logits = jnp.log(jnp.maximum(wt, 1e-6))
    noise = -jnp.log(-jnp.log(u + eps) + eps)
    sm = jax.nn.softmax((logits + noise * noise_scaling) / temperature, axis=-1)
    cg = sm.T
    eij = cg / jnp.sum(cg, axis=1, keepdims=True)
    enc = jnp.einsum('cn,bnd->bcd', eij, xyz)
    return jnp.transpose(enc, (0, 2, 1))


if __name__ == "__main__":
    # Shapes consistent with the module: input_dim (n_aa)=16, out_dim (n_cg)=8,
    # batch=2, 3 spatial coordinates per atom.
    B, N_AA, N_CG, D = 2, 16, 8, 3
    TEMPERATURE = 1.0          # stands in for scheduler.current_temperature()
    NOISE_SCALING = 0.1

    key = jax.random.PRNGKey(0)
    kw, ku, kx = jax.random.split(key, 3)
    weight = jax.random.uniform(kw, (N_CG, N_AA), dtype=jnp.float32)   # torch.rand init
    u = jax.random.uniform(ku, (N_AA, N_CG), dtype=jnp.float32)        # Gumbel base noise
    xyz = jax.random.normal(kx, (B, N_AA, D), dtype=jnp.float32)

    out = gumbel_var_encoder_forward(weight, u, xyz, TEMPERATURE,
                                     noise_scaling=NOISE_SCALING)
    out = jax.block_until_ready(out)

    ref = _ref_forward(weight, u, xyz, TEMPERATURE, NOISE_SCALING)
    assert out.shape == (B, D, N_CG), out.shape
    # Only one approx (EUP) reciprocal remains (softmax denominator); the final
    # Eij normalization is an exact divide -> comfortably within 2e-3.
    assert jnp.allclose(out, ref, atol=2e-3, rtol=2e-3), "mismatch vs reference"
    print("KERNEL_OK")
</pallas_src>

<mosaic_0001>
module attributes {stable_mosaic.version = 11 : i64} {
  func.func @_gumbel_encoder_kernel(%arg0: i32, %arg1: memref<1xf32, #tpu.memory_space<smem>>, %arg2: memref<8x16xf32, #tpu.memory_space<vmem>>, %arg3: memref<16x8xf32, #tpu.memory_space<vmem>>, %arg4: memref<1x16x3xf32, #tpu.memory_space<vmem>>, %arg5: memref<1x3x8xf32, #tpu.memory_space<vmem>>) attributes {dimension_semantics = [#tpu.dimension_semantics<parallel>], iteration_bounds = array<i64: 2>, scalar_prefetch = 0 : i64, scratch_operands = 0 : i64, tpu.core_type = #tpu.core_type<tc>, window_params = [{transform_indices = @transform_0, window_bounds = array<i64: 1>}, {pipeline_mode = #tpu.pipeline_mode<synchronous>, transform_indices = @transform_1, window_bounds = array<i64: 8, 16>}, {pipeline_mode = #tpu.pipeline_mode<synchronous>, transform_indices = @transform_2, window_bounds = array<i64: 16, 8>}, {transform_indices = @transform_3, window_bounds = array<i64: 1, 16, 3>}, {transform_indices = @transform_4, window_bounds = array<i64: 1, 3, 8>}]} {
    %c0 = arith.constant 0 : index
    %0 = memref.load %arg1[%c0] : memref<1xf32, #tpu.memory_space<smem>>
    %cst = arith.constant 1.000000e+00 : f32
    %1 = arith.divf %cst, %0 : f32
    %c0_0 = arith.constant 0 : index
    %c0_1 = arith.constant 0 : index
    %2 = vector.load %arg2[%c0_0, %c0_1] : memref<8x16xf32, #tpu.memory_space<vmem>>, vector<8x16xf32>
    %3 = tpu.transpose %2, [1, 0] : vector<8x16xf32> -> vector<16x8xf32>
    %cst_2 = arith.constant 9.99999997E-7 : f32
    %4 = vector.broadcast %cst_2 : f32 to vector<16x8xf32>
    %5 = arith.maximumf %3, %4 : vector<16x8xf32>
    %6 = math.log %5 : vector<16x8xf32>
    %c0_3 = arith.constant 0 : index
    %c0_4 = arith.constant 0 : index
    %7 = vector.load %arg3[%c0_3, %c0_4] : memref<16x8xf32, #tpu.memory_space<vmem>>, vector<16x8xf32>
    %cst_5 = arith.constant 9.99999968E-21 : f32
    %8 = vector.broadcast %cst_5 : f32 to vector<16x8xf32>
    %9 = arith.addf %7, %8 : vector<16x8xf32>
    %10 = math.log %9 : vector<16x8xf32>
    %cst_6 = arith.constant 0.000000e+00 : f32
    %11 = vector.broadcast %cst_6 : f32 to vector<16x8xf32>
    %12 = arith.subf %11, %10 : vector<16x8xf32>
    %cst_7 = arith.constant 9.99999968E-21 : f32
    %13 = vector.broadcast %cst_7 : f32 to vector<16x8xf32>
    %14 = arith.addf %12, %13 : vector<16x8xf32>
    %15 = math.log %14 : vector<16x8xf32>
    %cst_8 = arith.constant 0.000000e+00 : f32
    %16 = vector.broadcast %cst_8 : f32 to vector<16x8xf32>
    %17 = arith.subf %16, %15 : vector<16x8xf32>
    %cst_9 = arith.constant 1.000000e-01 : f32
    %18 = vector.broadcast %cst_9 : f32 to vector<16x8xf32>
    %19 = arith.mulf %17, %18 : vector<16x8xf32>
    %20 = arith.addf %6, %19 : vector<16x8xf32>
    %21 = vector.broadcast %1 : f32 to vector<16x8xf32>
    %22 = arith.mulf %20, %21 : vector<16x8xf32>
    %cst_10 = arith.constant dense<0xFF800000> : vector<16xf32>
    %23 = vector.multi_reduction <maximumf>, %22, %cst_10 [1] : vector<16x8xf32> to vector<16xf32>
    %24 = vector.shape_cast %23 : vector<16xf32> to vector<16x1xf32>
    %25 = vector.broadcast %24 : vector<16x1xf32> to vector<16x8xf32>
    %26 = arith.subf %22, %25 : vector<16x8xf32>
    %27 = math.exp %26 : vector<16x8xf32>
    %cst_11 = arith.constant dense<0.000000e+00> : vector<16xf32>
    %28 = vector.multi_reduction <add>, %27, %cst_11 [1] : vector<16x8xf32> to vector<16xf32>
    %29 = vector.shape_cast %28 : vector<16xf32> to vector<16x1xf32>
    %30 = tpu.reciprocal %29 {approx = true} : vector<16x1xf32> -> vector<16x1xf32>
    %31 = vector.broadcast %30 : vector<16x1xf32> to vector<16x8xf32>
    %32 = arith.mulf %27, %31 : vector<16x8xf32>
    %cst_12 = arith.constant dense<0.000000e+00> : vector<8xf32>
    %33 = vector.multi_reduction <add>, %32, %cst_12 [0] : vector<16x8xf32> to vector<8xf32>
    %34 = vector.shape_cast %33 : vector<8xf32> to vector<1x8xf32>
    %35 = vector.broadcast %34 : vector<1x8xf32> to vector<16x8xf32>
    %36 = arith.divf %32, %35 : vector<16x8xf32>
    %c0_13 = arith.constant 0 : index
    %c0_14 = arith.constant 0 : index
    %c0_15 = arith.constant 0 : index
    %37 = vector.load %arg4[%c0_13, %c0_14, %c0_15] : memref<1x16x3xf32, #tpu.memory_space<vmem>>, vector<1x16x3xf32>
    %38 = vector.shape_cast %37 : vector<1x16x3xf32> to vector<16x3xf32>
    %cst_16 = arith.constant dense<0.000000e+00> : vector<3x8xf32>
    %39 = tpu.matmul %38, %36, %cst_16 {dimension_numbers = #tpu.dot_dimension_numbers<[0], [0], [1], [1], [0, 1, 1, 1], [], []>} : vector<16x3xf32>, vector<16x8xf32>, vector<3x8xf32> -> vector<3x8xf32>
    %c0_17 = arith.constant 0 : index
    %c0_18 = arith.constant 0 : index
    %c0_19 = arith.constant 0 : index
    %40 = vector.load %arg5[%c0_17, %c0_18, %c0_19] : memref<1x3x8xf32, #tpu.memory_space<vmem>>, vector<1x3x8xf32>
    %41 = vector.shape_cast %40 : vector<1x3x8xf32> to vector<3x8xf32>
    %42 = vector.shape_cast %39 : vector<3x8xf32> to vector<1x3x8xf32>
    tpu.vector_store %arg5[%c0_17, %c0_18, %c0_19], %42 {strides = array<i32>} : memref<1x3x8xf32, #tpu.memory_space<vmem>>, vector<1x3x8xf32>,
    return
  }
  func.func @transform_0(%arg0: i32) -> i32 {
    %c0_i32 = arith.constant 0 : i32
    %c0_i32_0 = arith.constant 0 : i32
    return %c0_i32 : i32
  }
  func.func @transform_1(%arg0: i32) -> (i32, i32) {
    %c0_i32 = arith.constant 0 : i32
    %c0_i32_0 = arith.constant 0 : i32
    %c0_i32_1 = arith.constant 0 : i32
    return %c0_i32, %c0_i32_0 : i32, i32
  }
  func.func @transform_2(%arg0: i32) -> (i32, i32) {
    %c0_i32 = arith.constant 0 : i32
    %c0_i32_0 = arith.constant 0 : i32
    %c0_i32_1 = arith.constant 0 : i32
    return %c0_i32, %c0_i32_0 : i32, i32
  }
  func.func @transform_3(%arg0: i32) -> (i32, i32, i32) {
    %c0_i32 = arith.constant 0 : i32
    %c0_i32_0 = arith.constant 0 : i32
    %c0_i32_1 = arith.constant 0 : i32
    return %arg0, %c0_i32, %c0_i32_0 : i32, i32, i32
  }
  func.func @transform_4(%arg0: i32) -> (i32, i32, i32) {
    %c0_i32 = arith.constant 0 : i32
    %c0_i32_0 = arith.constant 0 : i32
    %c0_i32_1 = arith.constant 0 : i32
    return %arg0, %c0_i32, %c0_i32_0 : i32, i32, i32
  }
}

</mosaic_0001>

<llo_original>
// kernel: gumbel_var_encoder_forward.1
$region0: #{gumbel_var_encoder_forward.1}
  #allocation0 [shape = 'u32[]', space=smem, size = 0x4, offset = 0x4, fixed_abs, tag = 'smem constant byte address 0x4 - core index']
  #allocation1 [shape = 'u32[144,128]{1,0:T(1,128)}', space=vmem, size = 0x12000, scoped, tag = 'internal scratch']
  #allocation2 [shape = 'f32[1]{0:T(128)S(6)}', space=smem, size = 0x200, scoped, tag = 'scoped memory for gumbel_var_encoder_forward.1']
  %s0 = inlined_call_operand.<no memory space> [shape: f32[1], index: 0, kind: input, shape index: {}]
  %s1 = inlined_call_operand.vmem [shape: f32[8,16], index: 1, kind: input, shape index: {}]
  %s2 = inlined_call_operand.vmem [shape: f32[16,8], index: 2, kind: input, shape index: {}]
  %s3 = inlined_call_operand.vmem [shape: f32[2,16,3], index: 3, kind: input, shape index: {}]
  %s4 = inlined_call_operand.vmem [shape: f32[2,3,8], index: 4, kind: output, shape index: {}]
  %s5 = sld [smem:[#allocation0]]
  $region49: #{gumbel_var_encoder_forward.1} parent=0
    _
  %s7 = ssub.s32 1, %s5
  %s8 = scalar_select 0, %s7, %s5
  %9 = sst [smem:[#allocation2]] %s0
  loop: start=0, step=1, limit=4
  $region2: #{gumbel_var_encoder_forward.1} parent=0 // loop_pre_header
    _
  $region3: #{gumbel_var_encoder_forward.1} parent=0 // loop_header
    %s11 = sphi 0, %s15
    %p12 = scmp.ge.s32.totalorder %s11, 4
    %s19 = sphi 0, %s19
    %s21 = sphi 0, %s19
    %s22 = sphi 0, %s21
    %s36 = sphi 0, %s22
    %s40 = sphi 0, %s40
    %s42 = sphi 0, %s40
    %s43 = sphi 0, %s42
    %s57 = sphi 0, %s43
    %s61 = sphi 0, %s61
    %s63 = sphi 0, %s61
    %s64 = sphi 0, %s63
    %s78 = sphi 0, %s64
    %s84 = sphi 0, %s86
    %s87 = sphi 0, %s84
    %s88 = sphi 0, %s87
    %s104 = sphi 0, %s88
    %s110 = sphi 0, %s112
    %s113 = sphi 0, %s110
    %s114 = sphi 0, %s113
    %s130 = sphi 0, %s114
  $region4: #{gumbel_var_encoder_forward.1} parent=0 // loop_header_branch
    %14 = sbr.rel (%p12) target = $region8
  $region5: #{gumbel_var_encoder_forward.1} parent=0 // loop_body
    %s16 = ssub.s32 %s11, 1
    %s17 = ssub.s32 %s11, 2
    %s18 = sadd.s32 %s11, 1
    %s20 = sadd.s32 %s19, 1
    %p23 = scmp.eq.s32.totalorder %s11, 1
    %p24 = scmp.ne.s32.totalorder %s19, %s21
    %p25 = scmp.eq.s32.totalorder %s11, 0
    %p26 = por %p24, %p25
    %p27 = scmp.ne.s32.totalorder %s19, %s21
    %p28 = scmp.eq.s32.totalorder %s16, 1
    %p29 = por %p27, %p28
    %p30 = scmp.ne.s32.totalorder %s21, %s22
    %p31 = scmp.eq.s32.totalorder %s16, 0
    %p32 = por %p30, %p31
    %p33 = scmp.ne.s32.totalorder %s21, %s22
    %p34 = scmp.eq.s32.totalorder %s17, 1
    %p35 = por %p33, %p34
    %p37 = scmp.ne.s32.totalorder %s22, %s36
    %p38 = scmp.eq.s32.totalorder %s17, 0
    %p39 = por %p37, %p38
    %s41 = sadd.s32 %s40, 1
    %p44 = scmp.eq.s32.totalorder %s11, 1
    %p45 = scmp.ne.s32.totalorder %s40, %s42
    %p46 = scmp.eq.s32.totalorder %s11, 0
    %p47 = por %p45, %p46
    %p48 = scmp.ne.s32.totalorder %s40, %s42
    %p49 = scmp.eq.s32.totalorder %s16, 1
    %p50 = por %p48, %p49
    %p51 = scmp.ne.s32.totalorder %s42, %s43
    %p52 = scmp.eq.s32.totalorder %s16, 0
    %p53 = por %p51, %p52
    %p54 = scmp.ne.s32.totalorder %s42, %s43
    %p55 = scmp.eq.s32.totalorder %s17, 1
    %p56 = por %p54, %p55
    %p58 = scmp.ne.s32.totalorder %s43, %s57
    %p59 = scmp.eq.s32.totalorder %s17, 0
    %p60 = por %p58, %p59
    %s62 = sadd.s32 %s61, 1
    %p65 = scmp.eq.s32.totalorder %s11, 1
    %p66 = scmp.ne.s32.totalorder %s61, %s63
    %p67 = scmp.eq.s32.totalorder %s11, 0
    %p68 = por %p66, %p67
    %p69 = scmp.ne.s32.totalorder %s61, %s63
    %p70 = scmp.eq.s32.totalorder %s16, 1
    %p71 = por %p69, %p70
    %p72 = scmp.ne.s32.totalorder %s63, %s64
    %p73 = scmp.eq.s32.totalorder %s16, 0
    %p74 = por %p72, %p73
    %p75 = scmp.ne.s32.totalorder %s63, %s64
    %p76 = scmp.eq.s32.totalorder %s17, 1
    %p77 = por %p75, %p76
    %p79 = scmp.ne.s32.totalorder %s64, %s78
    %p80 = scmp.eq.s32.totalorder %s17, 0
    %p81 = por %p79, %p80
    %s82 = ssub.s32 %s11, %s18
    %p83 = scmp.eq.s32.totalorder %s82, 0
    %s85 = sadd.s32 %s84, 1
    %s86 = scalar_select %p83, %s84, %s85
    %p89 = pneg %p83
    %p90 = scmp.eq.s32.totalorder %s11, 1
    %p91 = por %p89, %p90
    %p92 = scmp.ne.s32.totalorder %s84, %s87
    %p93 = scmp.eq.s32.totalorder %s11, 0
    %p94 = por %p92, %p93
    %p95 = scmp.ne.s32.totalorder %s84, %s87
    %p96 = scmp.eq.s32.totalorder %s16, 1
    %p97 = por %p95, %p96
    %p98 = scmp.ne.s32.totalorder %s87, %s88
    %p99 = scmp.eq.s32.totalorder %s16, 0
    %p100 = por %p98, %p99
    %p101 = scmp.ne.s32.totalorder %s87, %s88
    %p102 = scmp.eq.s32.totalorder %s17, 1
    %p103 = por %p101, %p102
    %p105 = scmp.ne.s32.totalorder %s88, %s104
    %p106 = scmp.eq.s32.totalorder %s17, 0
    %p107 = por %p105, %p106
    %s108 = ssub.s32 %s11, %s18
    %p109 = scmp.eq.s32.totalorder %s108, 0
    %s111 = sadd.s32 %s110, 1
    %s112 = scalar_select %p109, %s110, %s111
    %p115 = pneg %p109
    %p116 = scmp.eq.s32.totalorder %s11, 1
    %p117 = por %p115, %p116
    %p118 = scmp.ne.s32.totalorder %s110, %s113
    %p119 = scmp.eq.s32.totalorder %s11, 0
    %p120 = por %p118, %p119
    %p121 = scmp.ne.s32.totalorder %s110, %s113
    %p122 = scmp.eq.s32.totalorder %s16, 1
    %p123 = por %p121, %p122
    %p124 = scmp.ne.s32.totalorder %s113, %s114
    %p125 = scmp.eq.s32.totalorder %s16, 0
    %p126 = por %p124, %p125
    %p127 = scmp.ne.s32.totalorder %s113, %s114
    %p128 = scmp.eq.s32.totalorder %s17, 1
    %p129 = por %p127, %p128
    %p131 = scmp.ne.s32.totalorder %s114, %s130
    %p132 = scmp.eq.s32.totalorder %s17, 0
    %p133 = por %p131, %p132
    %p134 = scmp.le.s32.totalorder 1, %s11
    %p135 = scmp.lt.s32.totalorder %s11, 3
    %p136 = pnand %p134, %p135
    %p137 = pneg %p136
    // Predicated region
    $region9: #{gumbel_var_encoder_forward.1} parent=5 // pred_check
      _
    $region10: #{gumbel_var_encoder_forward.1} parent=5 // pred_check_branch
      %139 = sbr.rel (%p136) target = $region12
    $region11: #{gumbel_var_encoder_forward.1} parent=5 // pred_region
      %s140 = ssub.s32 %s11, 1
      // Predicated region
      $region13: #{gumbel_var_encoder_forward.1} parent=11 // pred_check
        %p141 = pneg %p32
      $region14: #{gumbel_var_encoder_forward.1} parent=11 // pred_check_branch
        %143 = sbr.rel (%p141) target = $region16
      $region15: #{gumbel_var_encoder_forward.1} parent=11 // pred_region
        _
      $region16: #{gumbel_var_encoder_forward.1} parent=11 // pred_fallthru
        _
      // Predicated region
      $region17: #{gumbel_var_encoder_forward.1} parent=11 // pred_check
        %p144 = pneg %p53
      $region18: #{gumbel_var_encoder_forward.1} parent=11 // pred_check_branch
        %146 = sbr.rel (%p144) target = $region20
      $region19: #{gumbel_var_encoder_forward.1} parent=11 // pred_region
        _
      $region20: #{gumbel_var_encoder_forward.1} parent=11 // pred_fallthru
        _
      // Predicated region
      $region21: #{gumbel_var_encoder_forward.1} parent=11 // pred_check
        %p147 = pneg %p74
      $region22: #{gumbel_var_encoder_forward.1} parent=11 // pred_check_branch
        %149 = sbr.rel (%p147) target = $region24
      $region23: #{gumbel_var_encoder_forward.1} parent=11 // pred_region
        _
      $region24: #{gumbel_var_encoder_forward.1} parent=11 // pred_fallthru
        _
    $region12: #{gumbel_var_encoder_forward.1} parent=5 // pred_fallthru
      _
    %p150 = scmp.lt.s32.totalorder %s11, 2
    // Predicated region
    $region25: #{gumbel_var_encoder_forward.1} parent=5 // pred_check
      %p151 = pneg %p150
    $region26: #{gumbel_var_encoder_forward.1} parent=5 // pred_check_branch
      %153 = sbr.rel (%p151) target = $region28
    $region27: #{gumbel_var_encoder_forward.1} parent=5 // pred_region
      // Predicated region
      $region29: #{gumbel_var_encoder_forward.1} parent=27 // pred_check
        %p154 = pneg %p94
      $region30: #{gumbel_var_encoder_forward.1} parent=27 // pred_check_branch
        %156 = sbr.rel (%p154) target = $region32
      $region31: #{gumbel_var_encoder_forward.1} parent=27 // pred_region
        %p157 = scmp.lt.s32.totalorder %s11, 1
        %s158 = scalar_select %p157, %s11, 1
        %s159 = smul.addr %s158, 2
        %s160 = smul.addr %s159, 8
        %s161 = scalar_lea.vmem %s3, %s160
      $region32: #{gumbel_var_encoder_forward.1} parent=27 // pred_fallthru
        _
    $region28: #{gumbel_var_encoder_forward.1} parent=5 // pred_fallthru
      _
    %p162 = scmp.le.s32.totalorder 1, %s11
    %p163 = scmp.lt.s32.totalorder %s11, 3
    %p164 = pnand %p162, %p163
    %p165 = pneg %p164
    // Predicated region
    $region33: #{gumbel_var_encoder_forward.1} parent=5 // pred_check
      _
    $region34: #{gumbel_var_encoder_forward.1} parent=5 // pred_check_branch
      %167 = sbr.rel (%p164) target = $region36
    $region35: #{gumbel_var_encoder_forward.1} parent=5 // pred_region
      %s168 = ssub.s32 %s11, 1
      %p169 = pneg %p32
      %p170 = pneg %p29
      %p171 = pneg %p53
      %p172 = pneg %p50
      %p173 = pneg %p74
      %p174 = pneg %p71
      %p175 = scmp.lt.s32.totalorder %s16, 1
      %s176 = scalar_select %p175, %s16, 1
      %s177 = smul.addr %s176, 2
      %s178 = smul.addr %s177, 8
      %s179 = scalar_lea.vmem %s3, %s178
      %p180 = pneg %p100
      %p181 = pneg %p97
      %p182 = pneg %p126
      %p183 = pneg %p123
      %p184 = scmp.lt.s32.totalorder %s16, 1
      %s185 = scalar_select %p184, %s16, 1
      %s186 = smul.addr %s185, 4
      %s187 = scalar_lea.vmem %s4, %s186
      %p188 = scmp.lt.s32.totalorder %s16, 1
      %s189 = scalar_select %p188, %s16, 1
      %s190 = smul.addr %s189, 2
      %s191 = smul.addr %s190, 8
      %s192 = scalar_lea.vmem %s3, %s191
      %p193 = scmp.lt.s32.totalorder %s16, 1
      %s194 = scalar_select %p193, %s16, 1
      %s195 = smul.addr %s194, 4
      %s196 = scalar_lea.vmem %s4, %s195
      %s197 = sld [smem:[#allocation2]]
      %v198 = vstv %s197
      %v199 = vrcp.pop %v198
      %s200 = vtos %v199
      %v201 = vld [vmem:[%s1] sm:$0xff]
      %202 = vxpose.xlu0.b32.start [1/16] %v201, 128
      %203 = vxpose.xlu0.b32.cont [2/16] 0.0, 128
      %204 = vxpose.xlu0.b32.cont [3/16] 0.0, 128
      %205 = vxpose.xlu0.b32.cont [4/16] 0.0, 128
      %206 = vxpose.xlu0.b32.cont [5/16] 0.0, 128
      %207 = vxpose.xlu0.b32.cont [6/16] 0.0, 128
      %208 = vxpose.xlu0.b32.cont [7/16] 0.0, 128
      %209 = vxpose.xlu0.b32.cont [8/16] 0.0, 128
      %210 = vxpose.xlu0.b32.cont [9/16] 0.0, 128
      %211 = vxpose.xlu0.b32.cont [10/16] 0.0, 128
      %212 = vxpose.xlu0.b32.cont [11/16] 0.0, 128
      %213 = vxpose.xlu0.b32.cont [12/16] 0.0, 128
      %214 = vxpose.xlu0.b32.cont [13/16] 0.0, 128
      %215 = vxpose.xlu0.b32.cont [14/16] 0.0, 128
      %216 = vxpose.xlu0.b32.cont [15/16] 0.0, 128
      %217 = vxpose.xlu0.b32.end [16/16] 0.0, 128
      %v218 = vpop.trf.xlu0
      %v219 = vpop.trf.xlu0
      %v220 = vpop.trf.xlu0
      %v221 = vpop.trf.xlu0
      %v222 = vpop.trf.xlu0
      %v223 = vpop.trf.xlu0
      %v224 = vpop.trf.xlu0
      %v225 = vpop.trf.xlu0
      %v226 = vpop.trf.xlu0
      %v227 = vpop.trf.xlu0
      %v228 = vpop.trf.xlu0
      %v229 = vpop.trf.xlu0
      %v230 = vpop.trf.xlu0
      %v231 = vpop.trf.xlu0
      %v232 = vpop.trf.xlu0
      %v233 = vpop.trf.xlu0
      %v234 = vmax.f32 %v218, 1e-06
      %v235 = vmax.f32 %v219, 1e-06
      %v236 = vlog2.pop %v234
      %v237 = vmul.f32 %v236, 0.6931472
      %v238 = vlog2.pop %v235
      %v239 = vmul.f32 %v238, 0.6931472
      %v240 = vld [vmem:[%s2] sm:$0xff]
      %v241 = vld [vmem:[%s2 + $0x8] sm:$0xff]
      %v242 = vadd.f32 %v240, 1e-20
      %v243 = vadd.f32 %v241, 1e-20
      %v244 = vlog2.pop %v242
      %v245 = vmul.f32 %v244, 0.6931472
      %v246 = vlog2.pop %v243
      %v247 = vmul.f32 %v246, 0.6931472
      %v248 = vsub.f32 0.0, %v245
      %v249 = vsub.f32 0.0, %v247
      %v250 = vadd.f32 %v248, 1e-20
      %v251 = vadd.f32 %v249, 1e-20
      %v252 = vlog2.pop %v250
      %v253 = vmul.f32 %v252, 0.6931472
      %v254 = vlog2.pop %v251
      %v255 = vmul.f32 %v254, 0.6931472
      %v256 = vsub.f32 0.0, %v253
      %v257 = vsub.f32 0.0, %v255
      %v258 = vmul.f32 %v256, 0.1
      %v259 = vmul.f32 %v257, 0.1
      %v260 = vadd.f32 %v237, %v258
      %v261 = vadd.f32 %v239, %v259
      %v262 = vstv %s200
      %v263 = vmul.f32 %v260, %v262
      %v264 = vmul.f32 %v261, %v262
      %vm265 = vcmask 64512
      %v266 = vsel %vm265, %v263, -inf
      %267 = vmax.xlane.f32.xlu0 %v266
      %v268 = vpop.xlane.xlu0 %267
      %v269 = vsel %vm265, %v264, -inf
      %270 = vmax.xlane.f32.xlu0 %v269
      %v271 = vpop.xlane.xlu0 %270
      %v272 = vsub.f32 %v263, %v268
      %v273 = vsub.f32 %v264, %v271
      %v274 = vmul.f32 %v272, 1.442695
      %v275 = vpow.pop %v274
      %v276 = vmul.f32 %v273, 1.442695
      %v277 = vpow.pop %v276
      %v278 = vsel %vm265, %v275, 0.0
      %279 = vadd.xlane.f32.xlu0 %v278
      %v280 = vpop.xlane.xlu0 %279
      %v281 = vsel %vm265, %v277, 0.0
      %282 = vadd.xlane.f32.xlu0 %v281
      %v283 = vpop.xlane.xlu0 %282
      %v284 = vrcp.pop %v280
      %v285 = vrcp.pop %v283
      %v286 = vmul.f32 %v275, %v284
      %v287 = vmul.f32 %v277, %v285
      %v288 = vsel %vm265, %v286, 0.0
      %v289 = vsel %vm265, %v287, 0.0
      %v290 = vadd.f32 %v288, %v289
      %v291 = vrot.slane %v290, 4
      %v292 = vadd.f32 %v290, %v291
      %v293 = vrot.slane %v292, 2
      %v294 = vadd.f32 %v292, %v293
      %v295 = vrot.slane %v294, 1
      %v296 = vadd.f32 %v294, %v295
      %v297 = vrcp.pop %v296
      %v298 = vmul.f32 %v286, %v297
      %v299 = vmul.f32 %v287, %v297
      %v300 = vld [vmem:[%s192] sm:$0xff]
      %v301 = vld [vmem:[%s192 + $0x8] sm:$0xff]
      %302 = vxpose.xlu0.b32.start [1/16] %v300, 128
      %303 = vxpose.xlu0.b32.cont [2/16] %v301, 128
      %304 = vxpose.xlu0.b32.cont [3/16] 0.0, 128
      %305 = vxpose.xlu0.b32.cont [4/16] 0.0, 128
      %306 = vxpose.xlu0.b32.cont [5/16] 0.0, 128
      %307 = vxpose.xlu0.b32.cont [6/16] 0.0, 128
      %308 = vxpose.xlu0.b32.cont [7/16] 0.0, 128
      %309 = vxpose.xlu0.b32.cont [8/16] 0.0, 128
      %310 = vxpose.xlu0.b32.cont [9/16] 0.0, 128
      %311 = vxpose.xlu0.b32.cont [10/16] 0.0, 128
      %312 = vxpose.xlu0.b32.cont [11/16] 0.0, 128
      %313 = vxpose.xlu0.b32.cont [12/16] 0.0, 128
      %314 = vxpose.xlu0.b32.cont [13/16] 0.0, 128
      %315 = vxpose.xlu0.b32.cont [14/16] 0.0, 128
      %316 = vxpose.xlu0.b32.cont [15/16] 0.0, 128
      %317 = vxpose.xlu0.b32.end [16/16] 0.0, 128
      %v318 = vpop.trf.xlu0
      %v319 = vpop.trf.xlu0
      %v320 = vpop.trf.xlu0
      %v321 = vpop.trf.xlu0
      %v322 = vpop.trf.xlu0
      %v323 = vpop.trf.xlu0
      %v324 = vpop.trf.xlu0
      %v325 = vpop.trf.xlu0
      %v326 = vpop.trf.xlu0
      %v327 = vpop.trf.xlu0
      %v328 = vpop.trf.xlu0
      %v329 = vpop.trf.xlu0
      %v330 = vpop.trf.xlu0
      %v331 = vpop.trf.xlu0
      %v332 = vpop.trf.xlu0
      %v333 = vpop.trf.xlu0
      %vm334 = vcmask 130048
      %v336 = vsel %vm334, %v318, 0
      %338 = vmatprep.subr.mxu0 0.0
      %339 = vmatpush1.msra.mxu0 %v298
      %340 = vmatprep.subr.mxu0 0.0
      %341 = vmatpush1.msra.mxu0 %v299
      %342 = vmatprep.subr.mxu0 0.0
      %343 = vmatpush1.msra.mxu0 0.0
      %344 = vmatprep.subr.mxu0 0.0
      %345 = vmatpush1.msra.mxu0 0.0
      %346 = vmatprep.subr.mxu0 0.0
      %347 = vmatpush1.msra.mxu0 0.0
      %348 = vmatprep.subr.mxu0 0.0
      %349 = vmatpush1.msra.mxu0 0.0
      %350 = vmatprep.subr.mxu0 0.0
      %351 = vmatpush1.msra.mxu0 0.0
      %352 = vmatprep.subr.mxu0 0.0
      %353 = vmatpush1.msra.mxu0 0.0
      %354 = vmatprep.subr.mxu0 0.0
      %355 = vmatpush1.msra.mxu0 0.0
      %356 = vmatprep.subr.mxu0 0.0
      %357 = vmatpush1.msra.mxu0 0.0
      %358 = vmatprep.subr.mxu0 0.0
      %359 = vmatpush1.msra.mxu0 0.0
      %360 = vmatprep.subr.mxu0 0.0
      %361 = vmatpush1.msra.mxu0 0.0
      %362 = vmatprep.subr.mxu0 0.0
      %363 = vmatpush1.msra.mxu0 0.0
      %364 = vmatprep.subr.mxu0 0.0
      %365 = vmatpush1.msra.mxu0 0.0
      %366 = vmatprep.subr.mxu0 0.0
      %367 = vmatpush1.msra.mxu0 0.0
      %368 = vmatprep.subr.mxu0 0.0
      %369 = vmatpush1.msra.mxu0 0.0
      %370 = vmatprep.subr.mxu0 0.0
      %371 = vmatpush1.msra.mxu0 0.0
      %372 = vmatprep.subr.mxu0 0.0
      %373 = vmatpush1.msra.mxu0 0.0
      %374 = vmatprep.subr.mxu0 0.0
      %375 = vmatpush1.msra.mxu0 0.0
      %376 = vmatprep.subr.mxu0 0.0
      %377 = vmatpush1.msra.mxu0 0.0
      %378 = vmatprep.subr.mxu0 0.0
      %379 = vmatpush1.msra.mxu0 0.0
      %380 = vmatprep.subr.mxu0 0.0
      %381 = vmatpush1.msra.mxu0 0.0
      %382 = vmatprep.subr.mxu0 0.0
      %383 = vmatpush1.msra.mxu0 0.0
      %384 = vmatprep.subr.mxu0 0.0
      %385 = vmatpush1.msra.mxu0 0.0
      %386 = vmatprep.subr.mxu0 0.0
      %387 = vmatpush1.msra.mxu0 0.0
      %388 = vmatprep.subr.mxu0 0.0
      %389 = vmatpush1.msra.mxu0 0.0
      %390 = vmatprep.subr.mxu0 0.0
      %391 = vmatpush1.msra.mxu0 0.0
      %392 = vmatprep.subr.mxu0 0.0
      %393 = vmatpush1.msra.mxu0 0.0
      %394 = vmatprep.subr.mxu0 0.0
      %395 = vmatpush1.msra.mxu0 0.0
      %396 = vmatprep.subr.mxu0 0.0
      %397 = vmatpush1.msra.mxu0 0.0
      %398 = vmatprep.subr.mxu0 0.0
      %399 = vmatpush1.msra.mxu0 0.0
      %400 = vmatprep.subr.mxu0 0.0
      %401 = vmatpush1.msra.mxu0 0.0
      %402 = vmatprep.mubr.f32.mxu0 0.0
      %403 = vmatmul.mubr.f32.gmra.mrb[0].mxu0 %v336
      %v404 = vpop.f32.mrb[0].mxu0
      %v405 = vadd.f32 0.0, %v404
      %v406 = vpop.f32.mrb[0].mxu0
      %407 = vdwg.mxu0
      %vm408 = vcmask 59392
      %409 = vst.msk [vmem:[%s196] sm:$0x7] %vm408, %v405
      %p410 = scmp.lt.s32.totalorder %s16, 1
      %s411 = scalar_select %p410, %s16, 1
      %s412 = smul.addr %s411, 4
      %s413 = scalar_lea.vmem %s4, %s412
      // Predicated region
      $region37: #{gumbel_var_encoder_forward.1} parent=35 // pred_check
        %p414 = pneg %p123
      $region38: #{gumbel_var_encoder_forward.1} parent=35 // pred_check_branch
        %416 = sbr.rel (%p414) target = $region40
      $region39: #{gumbel_var_encoder_forward.1} parent=35 // pred_region
        _
      $region40: #{gumbel_var_encoder_forward.1} parent=35 // pred_fallthru
        _
    $region36: #{gumbel_var_encoder_forward.1} parent=5 // pred_fallthru
      _
    %p417 = scmp.le.s32.totalorder 2, %s11
    // Predicated region
    $region41: #{gumbel_var_encoder_forward.1} parent=5 // pred_check
      %p418 = pneg %p417
    $region42: #{gumbel_var_encoder_forward.1} parent=5 // pred_check_branch
      %420 = sbr.rel (%p418) target = $region44
    $region43: #{gumbel_var_encoder_forward.1} parent=5 // pred_region
      %s421 = ssub.s32 %s11, 2
      // Predicated region
      $region45: #{gumbel_var_encoder_forward.1} parent=43 // pred_check
        %p422 = pneg %p129
      $region46: #{gumbel_var_encoder_forward.1} parent=43 // pred_check_branch
        %424 = sbr.rel (%p422) target = $region48
      $region47: #{gumbel_var_encoder_forward.1} parent=43 // pred_region
        %p425 = scmp.lt.s32.totalorder %s17, 1
        %s426 = scalar_select %p425, %s17, 1
        %s427 = smul.addr %s426, 4
        %s428 = scalar_lea.vmem %s4, %s427
      $region48: #{gumbel_var_encoder_forward.1} parent=43 // pred_fallthru
        _
    $region44: #{gumbel_var_encoder_forward.1} parent=5 // pred_fallthru
      _
  $region6: #{gumbel_var_encoder_forward.1} parent=0 // loop_footer
    %s15 = sadd.s32 1, %s11
  $region7: #{gumbel_var_encoder_forward.1} parent=0 // loop_footer_branch
    %10 = sbr.rel target = $region3
  $region8: #{gumbel_var_encoder_forward.1} parent=0 // loop_exit
    _

</llo_original>
